<compile_context>
chip_gen: v7x
topology: tpu7x:2x2x1
jax: 0.10.0
libtpu: 0.0.40
codegen_flags: <defaults>
</compile_context>

<pallas_src>
import functools

import jax
import jax.numpy as jnp
from jax.experimental import pallas as pl
from jax.experimental.pallas import tpu as pltpu


def _round_up(x, m):
    return (x + m - 1) // m * m


def _policy_kernel(x_ref, w_ref, b_ref, out_ref, *, Dp, Hp, Op, A):
    """One batch tile of the full MLP forward.

    x_ref  : (tile_m, Dp)        padded states
    w_ref  : (Dp + 2*Hp, Wc)     packed, zero-padded weights (W1 | W2 | W_heads)
    b_ref  : (8, Wc)             packed biases (rows 0,1,2 = b1, b2, b_heads)
    out_ref: (tile_m, Op)        lane-dense slab; cols [0,A)=mean, [A,2A)=log_std
    """
    x = x_ref[...]

    w1 = w_ref[0:Dp, 0:Hp]
    w2 = w_ref[Dp:Dp + Hp, 0:Hp]
    wh = w_ref[Dp + Hp:Dp + 2 * Hp, 0:Op]
    b1 = b_ref[0:1, 0:Hp]
    b2 = b_ref[1:2, 0:Hp]
    bh = b_ref[2:3, 0:Op]

    # fc1 + relu
    h1 = jnp.maximum(
        jnp.dot(x, w1, preferred_element_type=jnp.float32) + b1, 0.0)
    # fc2 + relu
    h2 = jnp.maximum(
        jnp.dot(h1, w2, preferred_element_type=jnp.float32) + b2, 0.0)

    # fused heads: single MXU pass, tanh over the whole slab.
    t = jnp.tanh(
        jnp.dot(h2, wh, preferred_element_type=jnp.float32) + bh)

    # exp(0.5 * tanh) only on the log_std columns [A, 2A); exp runs on the EUP
    # (separate bundle slot), the select is a cheap full-lane VPU op.
    col = jax.lax.broadcasted_iota(jnp.int32, t.shape, 1)
    is_log_std = jnp.logical_and(col >= A, col < 2 * A)
    out_ref[...] = jnp.where(is_log_std, jnp.exp(0.5 * t), t).astype(out_ref.dtype)


def pack_params(params, n_obs, hidden_size, n_actions):
    """One-time wrapper-side packing + zero-padding of the 8 parameter arrays.

    Returns (w_all, b_all, dims):
      w_all: [Dp + 2*Hp, Wc]  rows [0,Dp)=W1, [Dp,Dp+Hp)=W2, rest=concat(Wm,Ws)
      b_all: [8, Wc]          rows 0,1,2 = b1, b2, concat(bm,bs)
    Padding is zeros, so padded hidden channels stay exactly 0 through the relu
    chain and contribute nothing to the heads.
    """
    w1, b1, w2, b2, wm, bm, ws, bs = params
    D, H, A = n_obs, hidden_size, n_actions
    Dp = _round_up(D, 128)
    Hp = _round_up(H, 128)
    Op = _round_up(2 * A, 128)
    Wc = max(Hp, Op)

    wh = jnp.concatenate([wm, ws], axis=1)   # [H, 2A] fused head weight
    bh = jnp.concatenate([bm, bs], axis=1)   # [1, 2A] fused head bias

    def pad2(x, rows, cols):
        return jnp.pad(x, ((0, rows - x.shape[0]), (0, cols - x.shape[1])))

    w_all = jnp.concatenate(
        [pad2(w1, Dp, Wc), pad2(w2, Hp, Wc), pad2(wh, Hp, Wc)], axis=0)
    b_all = jnp.concatenate(
        [pad2(b1, 1, Wc), pad2(b2, 1, Wc), pad2(bh, 1, Wc),
         jnp.zeros((5, Wc), jnp.float32)], axis=0)

    dims = {"D": D, "H": H, "A": A, "Dp": Dp, "Hp": Hp, "Op": Op, "Wc": Wc}
    return w_all, b_all, dims


def policy_network_forward(state, w_all, b_all, dims, *, tile_m=128):
    """Full forward pass; batch is tiled over a 1-D parallel grid."""
    B, D = state.shape
    Dp, Hp, Op, Wc, A = dims["Dp"], dims["Hp"], dims["Op"], dims["Wc"], dims["A"]

    tm = tile_m if B >= tile_m else _round_up(max(B, 1), 8)
    Bp = _round_up(B, tm)
    x = jnp.pad(state, ((0, Bp - B), (0, Dp - D)))

    kernel = functools.partial(_policy_kernel, Dp=Dp, Hp=Hp, Op=Op, A=A)

    out = pl.pallas_call(
        kernel,
        out_shape=jax.ShapeDtypeStruct((Bp, Op), jnp.float32),
        grid_spec=pltpu.PrefetchScalarGridSpec(
            num_scalar_prefetch=0,
            grid=(Bp // tm,),
            in_specs=[
                pl.BlockSpec((tm, Dp), lambda i: (i, 0)),            # states: tiled
                pl.BlockSpec((Dp + 2 * Hp, Wc), lambda i: (0, 0)),   # weights: resident
                pl.BlockSpec((8, Wc), lambda i: (0, 0)),             # biases: resident
            ],
            out_specs=pl.BlockSpec((tm, Op), lambda i: (i, 0)),
        ),
        compiler_params=pltpu.CompilerParams(
            dimension_semantics=("parallel",)),
    )(x, w_all, b_all)

    mean = out[:B, :A]
    log_std = out[:B, A:2 * A]
    return mean, log_std


def init_params(key, n_obs, n_actions, hidden_size, init_w=0.003):
    """Synthetic init mirroring the PyTorch module's shapes.

    fc1 / fc2: U(-1/sqrt(fan_in), 1/sqrt(fan_in)); heads: U(-init_w, init_w).
    Weights stored as [in, out] (transposed vs torch's [out, in]); biases [1, F].
    """
    ks = jax.random.split(key, 8)

    def lin(kw, kb, fan_in, fan_out, bound):
        w = jax.random.uniform(kw, (fan_in, fan_out), jnp.float32, -bound, bound)
        b = jax.random.uniform(kb, (1, fan_out), jnp.float32, -bound, bound)
        return w, b

    w1, b1 = lin(ks[0], ks[1], n_obs, hidden_size, 1.0 / float(jnp.sqrt(n_obs)))
    w2, b2 = lin(ks[2], ks[3], hidden_size, hidden_size,
                 1.0 / float(jnp.sqrt(hidden_size)))
    wm, bm = lin(ks[4], ks[5], hidden_size, n_actions, init_w)
    ws, bs = lin(ks[6], ks[7], hidden_size, n_actions, init_w)
    return (w1, b1, w2, b2, wm, bm, ws, bs)


def policy_network_ref(state, params):
    """Pure-JAX reference (f32-exact matmuls for a tight tolerance)."""
    w1, b1, w2, b2, wm, bm, ws, bs = params
    dot = lambda a, b: jnp.dot(a, b, precision=jax.lax.Precision.HIGHEST)
    h1 = jnp.maximum(dot(state, w1) + b1, 0.0)
    h2 = jnp.maximum(dot(h1, w2) + b2, 0.0)
    mean = jnp.tanh(dot(h2, wm) + bm)
    log_var = jnp.tanh(dot(h2, ws) + bs)
    return mean, jnp.exp(0.5 * log_var)


if __name__ == "__main__":
    # Small shapes consistent with the module's forward: state is [batch, n_obs].
    batch = 2
    n_obs = 16
    n_actions = 8
    hidden_size = 32

    key = jax.random.PRNGKey(0)
    k_params, k_state, k_state2 = jax.random.split(key, 3)

    params = init_params(k_params, n_obs, n_actions, hidden_size)
    w_all, b_all, dims = pack_params(params, n_obs, hidden_size, n_actions)

    # --- small batch (single grid tile) ---
    state = jax.random.normal(k_state, (batch, n_obs), jnp.float32)
    mean, log_std = policy_network_forward(state, w_all, b_all, dims)
    jax.block_until_ready((mean, log_std))

    mean_ref, log_std_ref = policy_network_ref(state, params)
    assert mean.shape == (batch, n_actions) and log_std.shape == (batch, n_actions)
    assert jnp.allclose(mean, mean_ref, atol=1e-5, rtol=1e-5)
    assert jnp.allclose(log_std, log_std_ref, atol=1e-5, rtol=1e-5)

    # --- larger batch exercising the multi-tile parallel grid + row padding ---
    big_batch = 300  # -> padded to 384, grid of 3 tiles of 128 rows
    state_big = jax.random.normal(k_state2, (big_batch, n_obs), jnp.float32)
    mean_b, log_std_b = policy_network_forward(state_big, w_all, b_all, dims)
    jax.block_until_ready((mean_b, log_std_b))
    mean_b_ref, log_std_b_ref = policy_network_ref(state_big, params)
    assert jnp.allclose(mean_b, mean_b_ref, atol=1e-5, rtol=1e-5)
    assert jnp.allclose(log_std_b, log_std_b_ref, atol=1e-5, rtol=1e-5)

    print("KERNEL_OK")
</pallas_src>

<mosaic_0001>
module attributes {stable_mosaic.version = 11 : i64} {
  func.func @_policy_kernel(%arg0: i32, %arg1: memref<8x128xf32, #tpu.memory_space<vmem>>, %arg2: memref<384x128xf32, #tpu.memory_space<vmem>>, %arg3: memref<8x128xf32, #tpu.memory_space<vmem>>, %arg4: memref<8x128xf32, #tpu.memory_space<vmem>>) attributes {dimension_semantics = [#tpu.dimension_semantics<parallel>], iteration_bounds = array<i64: 1>, scalar_prefetch = 0 : i64, scratch_operands = 0 : i64, tpu.core_type = #tpu.core_type<tc>, window_params = [{transform_indices = @transform_0, window_bounds = array<i64: 8, 128>}, {pipeline_mode = #tpu.pipeline_mode<synchronous>, transform_indices = @transform_1, window_bounds = array<i64: 384, 128>}, {pipeline_mode = #tpu.pipeline_mode<synchronous>, transform_indices = @transform_2, window_bounds = array<i64: 8, 128>}, {transform_indices = @transform_3, window_bounds = array<i64: 8, 128>}]} {
    %c0 = arith.constant 0 : index
    %c0_0 = arith.constant 0 : index
    %0 = vector.load %arg1[%c0, %c0_0] : memref<8x128xf32, #tpu.memory_space<vmem>>, vector<8x128xf32>
    %c0_1 = arith.constant 0 : index
    %c0_2 = arith.constant 0 : index
    %1 = vector.load %arg2[%c0_1, %c0_2] : memref<384x128xf32, #tpu.memory_space<vmem>>, vector<128x128xf32>
    %c128 = arith.constant 128 : index
    %c0_3 = arith.constant 0 : index
    %2 = vector.load %arg2[%c128, %c0_3] : memref<384x128xf32, #tpu.memory_space<vmem>>, vector<128x128xf32>
    %c256 = arith.constant 256 : index
    %c0_4 = arith.constant 0 : index
    %3 = vector.load %arg2[%c256, %c0_4] : memref<384x128xf32, #tpu.memory_space<vmem>>, vector<128x128xf32>
    %c0_5 = arith.constant 0 : index
    %c0_6 = arith.constant 0 : index
    %4 = vector.load %arg3[%c0_5, %c0_6] : memref<8x128xf32, #tpu.memory_space<vmem>>, vector<1x128xf32>
    %c1 = arith.constant 1 : index
    %c0_7 = arith.constant 0 : index
    %5 = vector.load %arg3[%c1, %c0_7] : memref<8x128xf32, #tpu.memory_space<vmem>>, vector<1x128xf32>
    %c2 = arith.constant 2 : index
    %c0_8 = arith.constant 0 : index
    %6 = vector.load %arg3[%c2, %c0_8] : memref<8x128xf32, #tpu.memory_space<vmem>>, vector<1x128xf32>
    %cst = arith.constant dense<0.000000e+00> : vector<8x128xf32>
    %7 = tpu.matmul %0, %1, %cst {dimension_numbers = #tpu.dot_dimension_numbers<[1], [0], [0], [1], [0, 0, 1, 1], [], []>} : vector<8x128xf32>, vector<128x128xf32>, vector<8x128xf32> -> vector<8x128xf32>
    %8 = vector.broadcast %4 : vector<1x128xf32> to vector<8x128xf32>
    %9 = arith.addf %7, %8 : vector<8x128xf32>
    %cst_9 = arith.constant 0.000000e+00 : f32
    %10 = vector.broadcast %cst_9 : f32 to vector<8x128xf32>
    %11 = arith.maximumf %9, %10 : vector<8x128xf32>
    %cst_10 = arith.constant dense<0.000000e+00> : vector<8x128xf32>
    %12 = tpu.matmul %11, %2, %cst_10 {dimension_numbers = #tpu.dot_dimension_numbers<[1], [0], [0], [1], [0, 0, 1, 1], [], []>} : vector<8x128xf32>, vector<128x128xf32>, vector<8x128xf32> -> vector<8x128xf32>
    %13 = vector.broadcast %5 : vector<1x128xf32> to vector<8x128xf32>
    %14 = arith.addf %12, %13 : vector<8x128xf32>
    %cst_11 = arith.constant 0.000000e+00 : f32
    %15 = vector.broadcast %cst_11 : f32 to vector<8x128xf32>
    %16 = arith.maximumf %14, %15 : vector<8x128xf32>
    %cst_12 = arith.constant dense<0.000000e+00> : vector<8x128xf32>
    %17 = tpu.matmul %16, %3, %cst_12 {dimension_numbers = #tpu.dot_dimension_numbers<[1], [0], [0], [1], [0, 0, 1, 1], [], []>} : vector<8x128xf32>, vector<128x128xf32>, vector<8x128xf32> -> vector<8x128xf32>
    %18 = vector.broadcast %6 : vector<1x128xf32> to vector<8x128xf32>
    %19 = arith.addf %17, %18 : vector<8x128xf32>
    %20 = math.tanh %19 : vector<8x128xf32>
    %21 = tpu.iota {dimensions = array<i32: 1>} : vector<8x128xi32>
    %c8_i32 = arith.constant 8 : i32
    %22 = vector.broadcast %c8_i32 : i32 to vector<8x128xi32>
    %23 = arith.cmpi sge, %21, %22 : vector<8x128xi32>
    %c16_i32 = arith.constant 16 : i32
    %24 = vector.broadcast %c16_i32 : i32 to vector<8x128xi32>
    %25 = arith.cmpi slt, %21, %24 : vector<8x128xi32>
    %26 = arith.andi %23, %25 : vector<8x128xi1>
    %cst_13 = arith.constant 5.000000e-01 : f32
    %27 = vector.broadcast %cst_13 : f32 to vector<8x128xf32>
    %28 = arith.mulf %27, %20 : vector<8x128xf32>
    %29 = math.exp %28 : vector<8x128xf32>
    %30 = arith.select %26, %29, %20 : vector<8x128xi1>, vector<8x128xf32>
    %c0_14 = arith.constant 0 : index
    %c0_15 = arith.constant 0 : index
    %31 = vector.load %arg4[%c0_14, %c0_15] : memref<8x128xf32, #tpu.memory_space<vmem>>, vector<8x128xf32>
    tpu.vector_store %arg4[%c0_14, %c0_15], %30 {strides = array<i32>} : memref<8x128xf32, #tpu.memory_space<vmem>>, vector<8x128xf32>,
    return
  }
  func.func @transform_0(%arg0: i32) -> (i32, i32) {
    %c0_i32 = arith.constant 0 : i32
    %c0_i32_0 = arith.constant 0 : i32
    return %arg0, %c0_i32 : i32, i32
  }
  func.func @transform_1(%arg0: i32) -> (i32, i32) {
    %c0_i32 = arith.constant 0 : i32
    %c0_i32_0 = arith.constant 0 : i32
    %c0_i32_1 = arith.constant 0 : i32
    return %c0_i32, %c0_i32_0 : i32, i32
  }
  func.func @transform_2(%arg0: i32) -> (i32, i32) {
    %c0_i32 = arith.constant 0 : i32
    %c0_i32_0 = arith.constant 0 : i32
    %c0_i32_1 = arith.constant 0 : i32
    return %c0_i32, %c0_i32_0 : i32, i32
  }
  func.func @transform_3(%arg0: i32) -> (i32, i32) {
    %c0_i32 = arith.constant 0 : i32
    %c0_i32_0 = arith.constant 0 : i32
    return %arg0, %c0_i32 : i32, i32
  }
}

</mosaic_0001>

<llo_original>
// kernel: tpu_custom_call.1
$region0: #{tpu_custom_call.1}
  #allocation0 [shape = 'u32[]', space=smem, size = 0x4, offset = 0x4, fixed_abs, tag = 'smem constant byte address 0x4 - core index']
  #allocation1 [shape = 'u32[144,128]{1,0:T(1,128)}', space=vmem, size = 0x12000, scoped, tag = 'internal scratch']
  %s0 = inlined_call_operand.hbm [shape: f32[8,128], index: 0, kind: input, shape index: {}]
  %s1 = inlined_call_operand.hbm [shape: f32[384,128], index: 1, kind: input, shape index: {}]
  %s2 = inlined_call_operand.hbm [shape: f32[8,128], index: 2, kind: input, shape index: {}]
  %s3 = inlined_call_operand.hbm [shape: f32[8,128], index: 3, kind: output, shape index: {}]
  %s4 = sld [smem:[#allocation0]]
  $region34: #{tpu_custom_call.1} parent=0
    _
  %s6 = ssub.s32 1, %s4
  %s7 = scalar_select 0, %s6, %s4
  $region1: #{tpu_custom_call.1} parent=0
    #allocation2 [shape = 'u8[4096]{0}', space=vmem, size = 0x1000, scoped, tag = 'input window, operand 0, single buffered']
    #allocation3 [shape = 's32[1]{0}', space=sflag, size = 0x4, scoped, tag = 'scoped memory for tpu_custom_call.1']
    #allocation4 [shape = 's32[1]{0}', space=sflag, size = 0x4, scoped, tag = 'scoped memory for tpu_custom_call.1']
    #allocation5 [shape = 'u8[196608]{0}', space=vmem, size = 0x30000, scoped, tag = 'input window, operand 1, single buffered']
    #allocation6 [shape = 's32[1]{0}', space=sflag, size = 0x4, scoped, tag = 'scoped memory for tpu_custom_call.1']
    #allocation7 [shape = 'u8[4096]{0}', space=vmem, size = 0x1000, scoped, tag = 'input window, operand 2, single buffered']
    #allocation8 [shape = 'u8[4096]{0}', space=vmem, size = 0x1000, scoped, tag = 'output window, operand 0, single buffered']
    %8 = vsyncpa [#allocation3], 0
    %9 = vsyncpa [#allocation6], 0
    %10 = vsyncpa [#allocation4], 0
    // Predicated region
    $region2: #{tpu_custom_call.1} parent=1 // pred_check
      _
    $region3: #{tpu_custom_call.1} parent=1 // pred_check_branch
      %12 = sbr.rel (0) target = $region5
    $region4: #{tpu_custom_call.1} parent=1 // pred_region
      %s14 = ssub.s32 128, 128
      %15 = vsyncadd [#allocation3], %s14
      %s17 = sshll.u32 [#allocation2], 4
      %s18 = int_to_ptr.vmem [resolvable:$true] %s17
      %20 = dma.hbm_to_vmem [thread:$0]  %s0, 128, %s18, [#allocation3]
    $region5: #{tpu_custom_call.1} parent=1 // pred_fallthru
      _
    // Predicated region
    $region6: #{tpu_custom_call.1} parent=1 // pred_check
      _
    $region7: #{tpu_custom_call.1} parent=1 // pred_check_branch
      %22 = sbr.rel (0) target = $region9
    $region8: #{tpu_custom_call.1} parent=1 // pred_region
      %s24 = ssub.s32 6144, 6144
      %25 = vsyncadd [#allocation6], %s24
      %s26 = sshll.u32 [#allocation5], 4
      %s27 = int_to_ptr.vmem [resolvable:$true] %s26
      %32 = dma.hbm_to_vmem [thread:$0]  %s1, 6144, %s27, [#allocation6], 128, 128, 8
    $region9: #{tpu_custom_call.1} parent=1 // pred_fallthru
      _
    // Predicated region
    $region10: #{tpu_custom_call.1} parent=1 // pred_check
      _
    $region11: #{tpu_custom_call.1} parent=1 // pred_check_branch
      %34 = sbr.rel (0) target = $region13
    $region12: #{tpu_custom_call.1} parent=1 // pred_region
      %s36 = ssub.s32 128, 128
      %37 = vsyncadd [#allocation6], %s36
      %s39 = sshll.u32 [#allocation7], 4
      %s40 = int_to_ptr.vmem [resolvable:$true] %s39
      %42 = dma.hbm_to_vmem [thread:$0]  %s2, 128, %s40, [#allocation6]
    $region13: #{tpu_custom_call.1} parent=1 // pred_fallthru
      _
    // Predicated region
    $region14: #{tpu_custom_call.1} parent=1 // pred_check
      _
    $region15: #{tpu_custom_call.1} parent=1 // pred_check_branch
      %44 = sbr.rel (0) target = $region17
    $region16: #{tpu_custom_call.1} parent=1 // pred_region
      %45 = dma.done [#allocation3], 128
    $region17: #{tpu_custom_call.1} parent=1 // pred_fallthru
      _
    // Predicated region
    $region18: #{tpu_custom_call.1} parent=1 // pred_check
      _
    $region19: #{tpu_custom_call.1} parent=1 // pred_check_branch
      %47 = sbr.rel (0) target = $region21
    $region20: #{tpu_custom_call.1} parent=1 // pred_region
      %48 = dma.done [#allocation6], 6144
    $region21: #{tpu_custom_call.1} parent=1 // pred_fallthru
      _
    // Predicated region
    $region22: #{tpu_custom_call.1} parent=1 // pred_check
      _
    $region23: #{tpu_custom_call.1} parent=1 // pred_check_branch
      %50 = sbr.rel (0) target = $region25
    $region24: #{tpu_custom_call.1} parent=1 // pred_region
      %51 = dma.done [#allocation6], 128
    $region25: #{tpu_custom_call.1} parent=1 // pred_fallthru
      _
    %v52 = vld [vmem:[#allocation2] sm:$0xff]
    %v53 = vld [vmem:[#allocation5] sm:$0xff]
    %v54 = vld [vmem:[#allocation5 + $0x8] sm:$0xff]
    %v55 = vld [vmem:[#allocation5 + $0x10] sm:$0xff]
    %v56 = vld [vmem:[#allocation5 + $0x18] sm:$0xff]
    %v57 = vld [vmem:[#allocation5 + $0x20] sm:$0xff]
    %v58 = vld [vmem:[#allocation5 + $0x28] sm:$0xff]
    %v59 = vld [vmem:[#allocation5 + $0x30] sm:$0xff]
    %v60 = vld [vmem:[#allocation5 + $0x38] sm:$0xff]
    %v61 = vld [vmem:[#allocation5 + $0x40] sm:$0xff]
    %v62 = vld [vmem:[#allocation5 + $0x48] sm:$0xff]
    %v63 = vld [vmem:[#allocation5 + $0x50] sm:$0xff]
    %v64 = vld [vmem:[#allocation5 + $0x58] sm:$0xff]
    %v65 = vld [vmem:[#allocation5 + $0x60] sm:$0xff]
    %v66 = vld [vmem:[#allocation5 + $0x68] sm:$0xff]
    %v67 = vld [vmem:[#allocation5 + $0x70] sm:$0xff]
    %v68 = vld [vmem:[#allocation5 + $0x78] sm:$0xff]
    %v69 = vld [vmem:[#allocation5 + $0x80] sm:$0xff]
    %v70 = vld [vmem:[#allocation5 + $0x88] sm:$0xff]
    %v71 = vld [vmem:[#allocation5 + $0x90] sm:$0xff]
    %v72 = vld [vmem:[#allocation5 + $0x98] sm:$0xff]
    %v73 = vld [vmem:[#allocation5 + $0xa0] sm:$0xff]
    %v74 = vld [vmem:[#allocation5 + $0xa8] sm:$0xff]
    %v75 = vld [vmem:[#allocation5 + $0xb0] sm:$0xff]
    %v76 = vld [vmem:[#allocation5 + $0xb8] sm:$0xff]
    %v77 = vld [vmem:[#allocation5 + $0xc0] sm:$0xff]
    %v78 = vld [vmem:[#allocation5 + $0xc8] sm:$0xff]
    %v79 = vld [vmem:[#allocation5 + $0xd0] sm:$0xff]
    %v80 = vld [vmem:[#allocation5 + $0xd8] sm:$0xff]
    %v81 = vld [vmem:[#allocation5 + $0xe0] sm:$0xff]
    %v82 = vld [vmem:[#allocation5 + $0xe8] sm:$0xff]
    %v83 = vld [vmem:[#allocation5 + $0xf0] sm:$0xff]
    %v84 = vld [vmem:[#allocation5 + $0xf8] sm:$0xff]
    %v85 = vld [vmem:[#allocation5 + $0x100] sm:$0xff]
    %v86 = vld [vmem:[#allocation5 + $0x108] sm:$0xff]
    %v87 = vld [vmem:[#allocation5 + $0x110] sm:$0xff]
    %v88 = vld [vmem:[#allocation5 + $0x118] sm:$0xff]
    %v89 = vld [vmem:[#allocation5 + $0x120] sm:$0xff]
    %v90 = vld [vmem:[#allocation5 + $0x128] sm:$0xff]
    %v91 = vld [vmem:[#allocation5 + $0x130] sm:$0xff]
    %v92 = vld [vmem:[#allocation5 + $0x138] sm:$0xff]
    %v93 = vld [vmem:[#allocation5 + $0x140] sm:$0xff]
    %v94 = vld [vmem:[#allocation5 + $0x148] sm:$0xff]
    %v95 = vld [vmem:[#allocation5 + $0x150] sm:$0xff]
    %v96 = vld [vmem:[#allocation5 + $0x158] sm:$0xff]
    %v97 = vld [vmem:[#allocation5 + $0x160] sm:$0xff]
    %v98 = vld [vmem:[#allocation5 + $0x168] sm:$0xff]
    %v99 = vld [vmem:[#allocation5 + $0x170] sm:$0xff]
    %v100 = vld [vmem:[#allocation5 + $0x178] sm:$0xff]
    %v101 = vld [vmem:[#allocation7] sm:$0x1]
    %v102 = vld [vmem:[#allocation7 + $0x1] sm:$0x1]
    %v103 = vld [vmem:[#allocation7 + $0x2] sm:$0x1]
    %v104 = vlaneseq
    %v105 = vshrl.u32 %v104, 7
    %v106 = vsub.s32 0, %v105
    %v107 = vrot.slane %v101, %v106
    %108 = vmatprep.subr.mxu0 0.0
    %109 = vmatpush1.msra.mxu0 %v53
    %110 = vmatprep.subr.mxu0 0.0
    %111 = vmatpush1.msra.mxu0 %v54
    %112 = vmatprep.subr.mxu0 0.0
    %113 = vmatpush1.msra.mxu0 %v55
    %114 = vmatprep.subr.mxu0 0.0
    %115 = vmatpush1.msra.mxu0 %v56
    %116 = vmatprep.subr.mxu0 0.0
    %117 = vmatpush1.msra.mxu0 %v57
    %118 = vmatprep.subr.mxu0 0.0
    %119 = vmatpush1.msra.mxu0 %v58
    %120 = vmatprep.subr.mxu0 0.0
    %121 = vmatpush1.msra.mxu0 %v59
    %122 = vmatprep.subr.mxu0 0.0
    %123 = vmatpush1.msra.mxu0 %v60
    %124 = vmatprep.subr.mxu0 0.0
    %125 = vmatpush1.msra.mxu0 %v61
    %126 = vmatprep.subr.mxu0 0.0
    %127 = vmatpush1.msra.mxu0 %v62
    %128 = vmatprep.subr.mxu0 0.0
    %129 = vmatpush1.msra.mxu0 %v63
    %130 = vmatprep.subr.mxu0 0.0
    %131 = vmatpush1.msra.mxu0 %v64
    %132 = vmatprep.subr.mxu0 0.0
    %133 = vmatpush1.msra.mxu0 %v65
    %134 = vmatprep.subr.mxu0 0.0
    %135 = vmatpush1.msra.mxu0 %v66
    %136 = vmatprep.subr.mxu0 0.0
    %137 = vmatpush1.msra.mxu0 %v67
    %138 = vmatprep.subr.mxu0 0.0
    %139 = vmatpush1.msra.mxu0 %v68
    %140 = vmatprep.subr.mxu0 0.0
    %141 = vmatpush1.msra.mxu0 0.0
    %142 = vmatprep.subr.mxu0 0.0
    %143 = vmatpush1.msra.mxu0 0.0
    %144 = vmatprep.subr.mxu0 0.0
    %145 = vmatpush1.msra.mxu0 0.0
    %146 = vmatprep.subr.mxu0 0.0
    %147 = vmatpush1.msra.mxu0 0.0
    %148 = vmatprep.subr.mxu0 0.0
    %149 = vmatpush1.msra.mxu0 0.0
    %150 = vmatprep.subr.mxu0 0.0
    %151 = vmatpush1.msra.mxu0 0.0
    %152 = vmatprep.subr.mxu0 0.0
    %153 = vmatpush1.msra.mxu0 0.0
    %154 = vmatprep.subr.mxu0 0.0
    %155 = vmatpush1.msra.mxu0 0.0
    %156 = vmatprep.subr.mxu0 0.0
    %157 = vmatpush1.msra.mxu0 0.0
    %158 = vmatprep.subr.mxu0 0.0
    %159 = vmatpush1.msra.mxu0 0.0
    %160 = vmatprep.subr.mxu0 0.0
    %161 = vmatpush1.msra.mxu0 0.0
    %162 = vmatprep.subr.mxu0 0.0
    %163 = vmatpush1.msra.mxu0 0.0
    %164 = vmatprep.subr.mxu0 0.0
    %165 = vmatpush1.msra.mxu0 0.0
    %166 = vmatprep.subr.mxu0 0.0
    %167 = vmatpush1.msra.mxu0 0.0
    %168 = vmatprep.subr.mxu0 0.0
    %169 = vmatpush1.msra.mxu0 0.0
    %170 = vmatprep.subr.mxu0 0.0
    %171 = vmatpush1.msra.mxu0 0.0
    %172 = vmatprep.mubr.f32.mxu0 0.0
    %173 = vmatmul.mubr.f32.gmra.mrb[0].mxu0 %v52
    %v174 = vpop.f32.mrb[0].mxu0
    %v175 = vadd.f32 %v107, %v174
    %v176 = vpop.f32.mrb[0].mxu0
    %177 = vdwg.mxu0
    %v178 = vmax.f32 %v175, 0.0
    %v179 = vlaneseq
    %v180 = vshrl.u32 %v179, 7
    %v181 = vsub.s32 0, %v180
    %v182 = vrot.slane %v102, %v181
    %183 = vmatprep.subr.mxu0 0.0
    %184 = vmatpush1.msra.mxu0 %v69
    %185 = vmatprep.subr.mxu0 0.0
    %186 = vmatpush1.msra.mxu0 %v70
    %187 = vmatprep.subr.mxu0 0.0
    %188 = vmatpush1.msra.mxu0 %v71
    %189 = vmatprep.subr.mxu0 0.0
    %190 = vmatpush1.msra.mxu0 %v72
    %191 = vmatprep.subr.mxu0 0.0
    %192 = vmatpush1.msra.mxu0 %v73
    %193 = vmatprep.subr.mxu0 0.0
    %194 = vmatpush1.msra.mxu0 %v74
    %195 = vmatprep.subr.mxu0 0.0
    %196 = vmatpush1.msra.mxu0 %v75
    %197 = vmatprep.subr.mxu0 0.0
    %198 = vmatpush1.msra.mxu0 %v76
    %199 = vmatprep.subr.mxu0 0.0
    %200 = vmatpush1.msra.mxu0 %v77
    %201 = vmatprep.subr.mxu0 0.0
    %202 = vmatpush1.msra.mxu0 %v78
    %203 = vmatprep.subr.mxu0 0.0
    %204 = vmatpush1.msra.mxu0 %v79
    %205 = vmatprep.subr.mxu0 0.0
    %206 = vmatpush1.msra.mxu0 %v80
    %207 = vmatprep.subr.mxu0 0.0
    %208 = vmatpush1.msra.mxu0 %v81
    %209 = vmatprep.subr.mxu0 0.0
    %210 = vmatpush1.msra.mxu0 %v82
    %211 = vmatprep.subr.mxu0 0.0
    %212 = vmatpush1.msra.mxu0 %v83
    %213 = vmatprep.subr.mxu0 0.0
    %214 = vmatpush1.msra.mxu0 %v84
    %215 = vmatprep.subr.mxu0 0.0
    %216 = vmatpush1.msra.mxu0 0.0
    %217 = vmatprep.subr.mxu0 0.0
    %218 = vmatpush1.msra.mxu0 0.0
    %219 = vmatprep.subr.mxu0 0.0
    %220 = vmatpush1.msra.mxu0 0.0
    %221 = vmatprep.subr.mxu0 0.0
    %222 = vmatpush1.msra.mxu0 0.0
    %223 = vmatprep.subr.mxu0 0.0
    %224 = vmatpush1.msra.mxu0 0.0
    %225 = vmatprep.subr.mxu0 0.0
    %226 = vmatpush1.msra.mxu0 0.0
    %227 = vmatprep.subr.mxu0 0.0
    %228 = vmatpush1.msra.mxu0 0.0
    %229 = vmatprep.subr.mxu0 0.0
    %230 = vmatpush1.msra.mxu0 0.0
    %231 = vmatprep.subr.mxu0 0.0
    %232 = vmatpush1.msra.mxu0 0.0
    %233 = vmatprep.subr.mxu0 0.0
    %234 = vmatpush1.msra.mxu0 0.0
    %235 = vmatprep.subr.mxu0 0.0
    %236 = vmatpush1.msra.mxu0 0.0
    %237 = vmatprep.subr.mxu0 0.0
    %238 = vmatpush1.msra.mxu0 0.0
    %239 = vmatprep.subr.mxu0 0.0
    %240 = vmatpush1.msra.mxu0 0.0
    %241 = vmatprep.subr.mxu0 0.0
    %242 = vmatpush1.msra.mxu0 0.0
    %243 = vmatprep.subr.mxu0 0.0
    %244 = vmatpush1.msra.mxu0 0.0
    %245 = vmatprep.subr.mxu0 0.0
    %246 = vmatpush1.msra.mxu0 0.0
    %247 = vmatprep.mubr.f32.mxu0 0.0
    %248 = vmatmul.mubr.f32.gmra.mrb[0].mxu0 %v178
    %v249 = vpop.f32.mrb[0].mxu0
    %v250 = vadd.f32 %v182, %v249
    %v251 = vpop.f32.mrb[0].mxu0
    %252 = vdwg.mxu0
    %v253 = vmax.f32 %v250, 0.0
    %v254 = vlaneseq
    %v255 = vshrl.u32 %v254, 7
    %v256 = vsub.s32 0, %v255
    %v257 = vrot.slane %v103, %v256
    %258 = vmatprep.subr.mxu0 0.0
    %259 = vmatpush1.msra.mxu0 %v85
    %260 = vmatprep.subr.mxu0 0.0
    %261 = vmatpush1.msra.mxu0 %v86
    %262 = vmatprep.subr.mxu0 0.0
    %263 = vmatpush1.msra.mxu0 %v87
    %264 = vmatprep.subr.mxu0 0.0
    %265 = vmatpush1.msra.mxu0 %v88
    %266 = vmatprep.subr.mxu0 0.0
    %267 = vmatpush1.msra.mxu0 %v89
    %268 = vmatprep.subr.mxu0 0.0
    %269 = vmatpush1.msra.mxu0 %v90
    %270 = vmatprep.subr.mxu0 0.0
    %271 = vmatpush1.msra.mxu0 %v91
    %272 = vmatprep.subr.mxu0 0.0
    %273 = vmatpush1.msra.mxu0 %v92
    %274 = vmatprep.subr.mxu0 0.0
    %275 = vmatpush1.msra.mxu0 %v93
    %276 = vmatprep.subr.mxu0 0.0
    %277 = vmatpush1.msra.mxu0 %v94
    %278 = vmatprep.subr.mxu0 0.0
    %279 = vmatpush1.msra.mxu0 %v95
    %280 = vmatprep.subr.mxu0 0.0
    %281 = vmatpush1.msra.mxu0 %v96
    %282 = vmatprep.subr.mxu0 0.0
    %283 = vmatpush1.msra.mxu0 %v97
    %284 = vmatprep.subr.mxu0 0.0
    %285 = vmatpush1.msra.mxu0 %v98
    %286 = vmatprep.subr.mxu0 0.0
    %287 = vmatpush1.msra.mxu0 %v99
    %288 = vmatprep.subr.mxu0 0.0
    %289 = vmatpush1.msra.mxu0 %v100
    %290 = vmatprep.subr.mxu0 0.0
    %291 = vmatpush1.msra.mxu0 0.0
    %292 = vmatprep.subr.mxu0 0.0
    %293 = vmatpush1.msra.mxu0 0.0
    %294 = vmatprep.subr.mxu0 0.0
    %295 = vmatpush1.msra.mxu0 0.0
    %296 = vmatprep.subr.mxu0 0.0
    %297 = vmatpush1.msra.mxu0 0.0
    %298 = vmatprep.subr.mxu0 0.0
    %299 = vmatpush1.msra.mxu0 0.0
    %300 = vmatprep.subr.mxu0 0.0
    %301 = vmatpush1.msra.mxu0 0.0
    %302 = vmatprep.subr.mxu0 0.0
    %303 = vmatpush1.msra.mxu0 0.0
    %304 = vmatprep.subr.mxu0 0.0
    %305 = vmatpush1.msra.mxu0 0.0
    %306 = vmatprep.subr.mxu0 0.0
    %307 = vmatpush1.msra.mxu0 0.0
    %308 = vmatprep.subr.mxu0 0.0
    %309 = vmatpush1.msra.mxu0 0.0
    %310 = vmatprep.subr.mxu0 0.0
    %311 = vmatpush1.msra.mxu0 0.0
    %312 = vmatprep.subr.mxu0 0.0
    %313 = vmatpush1.msra.mxu0 0.0
    %314 = vmatprep.subr.mxu0 0.0
    %315 = vmatpush1.msra.mxu0 0.0
    %316 = vmatprep.subr.mxu0 0.0
    %317 = vmatpush1.msra.mxu0 0.0
    %318 = vmatprep.subr.mxu0 0.0
    %319 = vmatpush1.msra.mxu0 0.0
    %320 = vmatprep.subr.mxu0 0.0
    %321 = vmatpush1.msra.mxu0 0.0
    %322 = vmatprep.mubr.f32.mxu0 0.0
    %323 = vmatmul.mubr.f32.gmra.mrb[0].mxu0 %v253
    %v324 = vpop.f32.mrb[0].mxu0
    %v325 = vadd.f32 %v257, %v324
    %v326 = vpop.f32.mrb[0].mxu0
    %327 = vdwg.mxu0
    %v328 = vtanh.pop %v325
    %v329 = vlaneseq
    %v330 = vand.u32 %v329, 127
    %vm331 = vcmp.ge.s32.totalorder %v330, 8
    %vm332 = vcmp.lt.s32.totalorder %v330, 16
    %vm333 = vmand %vm331, %vm332
    %v334 = vmul.f32 %v328, 0.5
    %v335 = vmul.f32 %v334, 1.442695
    %v336 = vpow.pop %v335
    %v337 = vsel %vm333, %v336, %v328
    %338 = vst [vmem:[#allocation8] sm:$0xff] %v337
    // Predicated region
    $region26: #{tpu_custom_call.1} parent=1 // pred_check
      _
    $region27: #{tpu_custom_call.1} parent=1 // pred_check_branch
      %340 = sbr.rel (0) target = $region29
    $region28: #{tpu_custom_call.1} parent=1 // pred_region
      %s342 = ssub.s32 128, 128
      %343 = vsyncadd [#allocation4], %s342
      %s345 = sshll.u32 [#allocation8], 4
      %s346 = int_to_ptr.vmem [resolvable:$true] %s345
      %348 = dma.vmem_to_hbm [thread:$0]  %s346, 128, %s3, [#allocation4]
    $region29: #{tpu_custom_call.1} parent=1 // pred_fallthru
      _
    // Predicated region
    $region30: #{tpu_custom_call.1} parent=1 // pred_check
      _
    $region31: #{tpu_custom_call.1} parent=1 // pred_check_branch
      %350 = sbr.rel (0) target = $region33
    $region32: #{tpu_custom_call.1} parent=1 // pred_region
      %351 = dma.done [#allocation4], 128
    $region33: #{tpu_custom_call.1} parent=1 // pred_fallthru
      _
    %352 = vsyncpa [#allocation3], 1
    %353 = vsyncpa [#allocation6], 1
    %354 = vsyncpa [#allocation4], 1

</llo_original>
